<compile_context>
chip_gen: v7x
topology: tpu7x:2x2x1
jax: 0.10.0
libtpu: 0.0.40
codegen_flags: <defaults>
</compile_context>

<pallas_src>
import functools
import math

import jax
import jax.numpy as jnp
from jax.experimental import pallas as pl
from jax.experimental.pallas import tpu as pltpu


_TINY_PROBLEM_BYTES = 2 * 1024 * 1024     # below this, collapse to one grid step
_BANDED_MATMUL_MAX_C = 1024               # band matrix cap (C*C*4 <= 4 MiB)


# --------------------------------------------------------------------------
# Hardware queries (best-effort; safe fallbacks if the API shape differs).
# --------------------------------------------------------------------------
def _tpu_vmem_capacity_bytes():
    try:
        info = pltpu.get_tpu_info()
        for name in ("vmem_capacity_bytes", "vmem_bytes", "vmem_size_bytes"):
            v = getattr(info, name, None)
            if v:
                return int(v)
    except Exception:
        pass
    return 64 * 1024 * 1024               # conservative (v7x-sized) default


def _num_tensorcores():
    try:
        info = pltpu.get_tpu_info()
        for name in ("num_cores", "tensorcore_count", "core_count",
                     "num_tensorcores"):
            v = getattr(info, name, None)
            if v:
                return int(v)
    except Exception:
        pass
    return 1                              # single-core (v5e/v6e) default


# --------------------------------------------------------------------------
# Channel-conv helpers.
# --------------------------------------------------------------------------
def _build_band(conv_w, c):
    """Banded (C, C) matrix s.t. (y @ band)[:, j] == zero-padded conv at j.

    Built once in the wrapper (tiny), passed to the kernels as a VMEM input
    with a constant index_map, so it is never rebuilt per grid step."""
    k = conv_w.shape[-1]
    pad = (k - 1) // 2
    w = conv_w.reshape(k).astype(jnp.float32)
    row = jax.lax.broadcasted_iota(jnp.int32, (c, c), 0)   # input channel i
    col = jax.lax.broadcasted_iota(jnp.int32, (c, c), 1)   # output channel j
    band = jnp.zeros((c, c), jnp.float32)
    for t in range(k):
        band = band + jnp.where(row - col == t - pad, w[t], 0.0)
    return band


def _pooled_gate(y, band_ref=None, w_ref=None, k_size=0, pad=0):
    """sigmoid(zero-padded 1-D conv along channels) of pooled y: (bt, C) f32."""
    if band_ref is not None:
        # Pre-built band on the otherwise-idle MXU.  HIGHEST keeps the tiny
        # k-tap conv exact vs. the f32 reference; the dot is O(bt*C*C) once
        # per block -> negligible next to the block DMA.
        out = jnp.dot(y, band_ref[...], preferred_element_type=jnp.float32,
                      precision=jax.lax.Precision.HIGHEST)
    else:
        # Large-C fallback: O(k*C) taps on the tiny pooled vector, taps read
        # as scalars from SMEM.
        c = y.shape[-1]
        if pad > 0:
            z = jnp.zeros((y.shape[0], pad), dtype=y.dtype)
            yp = jnp.concatenate([z, y, z], axis=-1)
        else:
            yp = y
        out = jnp.zeros_like(y)
        for t in range(k_size):
            out = out + w_ref[t] * jax.lax.slice_in_dim(yp, t, t + c, axis=-1)
    return jax.nn.sigmoid(out)


# --------------------------------------------------------------------------
# Kernels.
# --------------------------------------------------------------------------
def _eca_fused_band_kernel(band_ref, x_ref, o_ref, *, inv_hw):
    """Fused pass on a (bt, C, HW) block: pool + conv + sigmoid + gate."""
    x = x_ref[...]                                           # native dtype
    y = jnp.sum(x, axis=-1, dtype=jnp.float32) * inv_hw      # (bt, C) pool
    g = _pooled_gate(y, band_ref=band_ref)                   # (bt, C)
    o_ref[...] = x * g.astype(o_ref.dtype)[:, :, None]       # native-dtype mul


def _eca_fused_taps_kernel(w_ref, x_ref, o_ref, *, k_size, pad, inv_hw):
    x = x_ref[...]
    y = jnp.sum(x, axis=-1, dtype=jnp.float32) * inv_hw
    g = _pooled_gate(y, w_ref=w_ref, k_size=k_size, pad=pad)
    o_ref[...] = x * g.astype(o_ref.dtype)[:, :, None]


def _eca_pool_gate_band_kernel(band_ref, x_ref, gate_ref, acc_ref, *,
                               inv_hw, hw, thw, mask_tail):
    """Two-pass path, pass 1: accumulate pool over HW tiles; emit (1,1,C) gate."""
    h = pl.program_id(1)

    @pl.when(h == 0)
    def _init():
        acc_ref[...] = jnp.zeros_like(acc_ref)

    x = x_ref[...]                                           # (1, C, thw)
    if mask_tail:                                            # ragged last tile
        lane = jax.lax.broadcasted_iota(jnp.int32, x.shape, 2)
        x = jnp.where(lane < hw - h * thw, x, jnp.zeros_like(x))
    acc_ref[...] += jnp.sum(x, axis=-1, dtype=jnp.float32)   # (1, C)

    @pl.when(h == pl.num_programs(1) - 1)
    def _finalize():
        y = acc_ref[...] * inv_hw                            # (1, C)
        g = _pooled_gate(y, band_ref=band_ref)               # (1, C)
        gate_ref[...] = g[:, None, :]                        # (1, 1, C), lane-dense


def _eca_pool_gate_taps_kernel(w_ref, x_ref, gate_ref, acc_ref, *,
                               k_size, pad, inv_hw, hw, thw, mask_tail):
    h = pl.program_id(1)

    @pl.when(h == 0)
    def _init():
        acc_ref[...] = jnp.zeros_like(acc_ref)

    x = x_ref[...]
    if mask_tail:
        lane = jax.lax.broadcasted_iota(jnp.int32, x.shape, 2)
        x = jnp.where(lane < hw - h * thw, x, jnp.zeros_like(x))
    acc_ref[...] += jnp.sum(x, axis=-1, dtype=jnp.float32)

    @pl.when(h == pl.num_programs(1) - 1)
    def _finalize():
        y = acc_ref[...] * inv_hw
        g = _pooled_gate(y, w_ref=w_ref, k_size=k_size, pad=pad)
        gate_ref[...] = g[:, None, :]


def _eca_apply_kernel(gate_ref, x_ref, o_ref):
    """Two-pass path, pass 2: out = x * gate (broadcast over lanes, native dtype)."""
    x = x_ref[...]                                           # (1, C, thw)
    g = gate_ref[0]                                          # (1, C)
    o_ref[...] = x * g.astype(o_ref.dtype)[:, :, None]


# --------------------------------------------------------------------------
# Tiling / budgeting helpers.
# --------------------------------------------------------------------------
def _pick_batch_tile(batch, per_batch_bytes, budget, num_cores):
    """Batch rows per fused block (cdiv grid), or None if one row won't fit."""
    max_bt = budget // per_batch_bytes
    if max_bt < 1:
        return None
    bt = min(batch, int(max_bt))
    total = batch * per_batch_bytes
    if num_cores >= 2 and batch >= 2 and total > _TINY_PROBLEM_BYTES:
        # Multi-core (v7x): keep a multiple of num_cores grid steps so every
        # TensorCore gets work; single-core chips take the largest tile.
        steps = max(num_cores, -(-batch // bt))
        steps = -(-steps // num_cores) * num_cores
        steps = min(steps, batch)
        bt = -(-batch // steps)
    return bt


def _pick_hw_tile(hw, per_lane_bytes, budget):
    """Lane tile for the fallback: multiple of 128 whose (C, thw) block fits."""
    if hw * per_lane_bytes <= budget or hw <= 128:
        return hw
    t = (budget // per_lane_bytes) // 128 * 128
    return int(min(max(t, 128), hw))


def _vmem_limit(block_bytes, extra_bytes, cap):
    """in+out double-buffered blocks + resident extras + slack, capped at ~81%
    of physical VMEM (no fixed 48 MiB clamp)."""
    need = 4 * block_bytes + extra_bytes + (8 << 20)
    return int(min(max(need, 32 << 20), cap))


# --------------------------------------------------------------------------
# Wrapper.
# --------------------------------------------------------------------------
def eca_layer_pallas(x, conv_w, *, block_budget_bytes=None):
    """ECA forward.  x: (B, C, H, W); conv_w: (1, 1, k) Conv1d weight (no bias)."""
    B, C, H, W = x.shape
    HW = H * W
    k_size = conv_w.shape[-1]
    pad = (k_size - 1) // 2
    inv_hw = 1.0 / HW
    itemsize = jnp.dtype(x.dtype).itemsize

    vmem_cap = _tpu_vmem_capacity_bytes()
    vmem_limit_cap = (vmem_cap * 13) // 16            # ~81% of physical VMEM

    use_band = C <= _BANDED_MATMUL_MAX_C
    band = _build_band(conv_w, C) if use_band else None
    w_flat = conv_w.reshape(k_size).astype(jnp.float32)
    extra_resident = (2 * 4 * C * C) if use_band else 4096

    if block_budget_bytes is None:
        block_budget_bytes = max(
            1 << 20, (vmem_limit_cap - extra_resident - (8 << 20)) // 4)

    # Lane-dense layout: flatten spatial dims (free for contiguous NCHW).
    x2 = x.reshape(B, C, HW)
    per_batch_bytes = C * HW * itemsize
    num_cores = _num_tensorcores()

    bt = _pick_batch_tile(B, per_batch_bytes, block_budget_bytes, num_cores)
    if bt is not None:
        # ---- Single fused pass (1 read + 1 write of x): one (bt, C, HW)
        # block per grid step; ragged last batch block handled by cdiv grid
        # (per-row math, OOB writes dropped). ----
        block_bytes = bt * per_batch_bytes
        vmem = _vmem_limit(block_bytes, extra_resident, vmem_limit_cap)
        grid = (pl.cdiv(B, bt),)
        if use_band:
            out2 = pl.pallas_call(
                functools.partial(_eca_fused_band_kernel, inv_hw=inv_hw),
                out_shape=jax.ShapeDtypeStruct((B, C, HW), x.dtype),
                grid=grid,
                in_specs=[pl.BlockSpec((C, C), lambda b: (0, 0)),
                          pl.BlockSpec((bt, C, HW), lambda b: (b, 0, 0))],
                out_specs=pl.BlockSpec((bt, C, HW), lambda b: (b, 0, 0)),
                compiler_params=pltpu.CompilerParams(
                    dimension_semantics=("parallel",),
                    vmem_limit_bytes=vmem),
            )(band, x2)
        else:
            out2 = pl.pallas_call(
                functools.partial(_eca_fused_taps_kernel,
                                  k_size=k_size, pad=pad, inv_hw=inv_hw),
                out_shape=jax.ShapeDtypeStruct((B, C, HW), x.dtype),
                grid_spec=pltpu.PrefetchScalarGridSpec(
                    num_scalar_prefetch=1,                 # conv taps -> SMEM
                    grid=grid,
                    in_specs=[pl.BlockSpec((bt, C, HW), lambda b, w: (b, 0, 0))],
                    out_specs=pl.BlockSpec((bt, C, HW), lambda b, w: (b, 0, 0))),
                compiler_params=pltpu.CompilerParams(
                    dimension_semantics=("parallel",),
                    vmem_limit_bytes=vmem),
            )(w_flat, x2)
        return out2.reshape(B, C, H, W)

    # ---- Two-pass fallback when a single batch row exceeds the per-block
    # budget (very large C*HW, mostly a v7x regime). ----
    # TODO(synk): replace with a channel-tiled fused pass (Ct + pad halo) to cut
    # HBM traffic from ~3x to ~2x of the array size in this regime.
    thw = _pick_hw_tile(HW, C * itemsize, block_budget_bytes)
    n_hw = pl.cdiv(HW, thw)
    mask_tail = (HW % thw) != 0
    block_bytes = C * thw * itemsize
    vmem = _vmem_limit(block_bytes, extra_resident, vmem_limit_cap)

    if use_band:
        gate = pl.pallas_call(
            functools.partial(_eca_pool_gate_band_kernel, inv_hw=inv_hw,
                              hw=HW, thw=thw, mask_tail=mask_tail),
            out_shape=jax.ShapeDtypeStruct((B, 1, C), jnp.float32),
            grid=(B, n_hw),
            in_specs=[pl.BlockSpec((C, C), lambda b, h: (0, 0)),
                      pl.BlockSpec((1, C, thw), lambda b, h: (b, 0, h))],
            out_specs=pl.BlockSpec((1, 1, C), lambda b, h: (b, 0, 0)),
            scratch_shapes=[pltpu.VMEM((1, C), jnp.float32)],
            compiler_params=pltpu.CompilerParams(
                dimension_semantics=("parallel", "arbitrary"),
                vmem_limit_bytes=vmem),
        )(band, x2)
    else:
        gate = pl.pallas_call(
            functools.partial(_eca_pool_gate_taps_kernel, k_size=k_size,
                              pad=pad, inv_hw=inv_hw, hw=HW, thw=thw,
                              mask_tail=mask_tail),
            out_shape=jax.ShapeDtypeStruct((B, 1, C), jnp.float32),
            grid_spec=pltpu.PrefetchScalarGridSpec(
                num_scalar_prefetch=1,
                grid=(B, n_hw),
                in_specs=[pl.BlockSpec((1, C, thw), lambda b, h, w: (b, 0, h))],
                out_specs=pl.BlockSpec((1, 1, C), lambda b, h, w: (b, 0, 0)),
                scratch_shapes=[pltpu.VMEM((1, C), jnp.float32)]),
            compiler_params=pltpu.CompilerParams(
                dimension_semantics=("parallel", "arbitrary"),
                vmem_limit_bytes=vmem),
        )(w_flat, x2)

    out2 = pl.pallas_call(
        _eca_apply_kernel,
        out_shape=jax.ShapeDtypeStruct((B, C, HW), x.dtype),
        grid=(B, n_hw),
        in_specs=[pl.BlockSpec((1, 1, C), lambda b, h: (b, 0, 0)),
                  pl.BlockSpec((1, C, thw), lambda b, h: (b, 0, h))],
        out_specs=pl.BlockSpec((1, C, thw), lambda b, h: (b, 0, h)),
        compiler_params=pltpu.CompilerParams(
            dimension_semantics=("parallel", "parallel"),
            vmem_limit_bytes=vmem),
    )(gate, x2)
    return out2.reshape(B, C, H, W)


def eca_layer_ref(x, conv_w):
    """Pure-JAX reference mirroring the PyTorch forward."""
    k = conv_w.shape[-1]
    pad = (k - 1) // 2
    C = x.shape[1]
    y = jnp.mean(x, axis=(2, 3))                       # (B, C)
    yp = jnp.pad(y, ((0, 0), (pad, pad)))
    out = sum(conv_w[0, 0, t] * yp[:, t:t + C] for t in range(k))
    s = jax.nn.sigmoid(out)
    return x * s[:, :, None, None]


if __name__ == "__main__":
    # Module config: channel=32 -> k_size = int(|(log2(32)+1)/2|) = 3, padding=1
    B, C, H, W = 2, 32, 16, 16
    gamma, bias = 2, 1
    k_size = int(abs((math.log(C, 2) + bias) / gamma))
    k_size = k_size if k_size % 2 else k_size + 1

    key = jax.random.PRNGKey(0)
    kx, kw, kx2 = jax.random.split(key, 3)
    x = jax.random.normal(kx, (B, C, H, W), dtype=jnp.float32)
    bound = 1.0 / math.sqrt(k_size)
    conv_w = jax.random.uniform(kw, (1, 1, k_size), jnp.float32, -bound, bound)

    ref = jax.block_until_ready(eca_layer_ref(x, conv_w))

    # Default path: fused single-pass whole-row blocks (generation-aware budget).
    out_fused = jax.block_until_ready(eca_layer_pallas(x, conv_w))
    assert out_fused.shape == x.shape and out_fused.dtype == x.dtype
    assert jnp.allclose(out_fused, ref, atol=1e-4, rtol=1e-4), "fused path mismatch"

    # Force the two-pass fallback (tiled pool -> gate, then apply) so it stays
    # exercised at small shapes too.
    out_two = jax.block_until_ready(
        eca_layer_pallas(x, conv_w, block_budget_bytes=16 * 1024))
    assert jnp.allclose(out_two, ref, atol=1e-4, rtol=1e-4), "two-pass path mismatch"

    # Non-divisor shapes (cdiv grids): odd batch with a ragged fused batch block,
    # and HW = 17*17 = 289 with a masked ragged HW tile in the fallback.
    x_odd = jax.random.normal(kx2, (3, C, 17, 17), dtype=jnp.float32)
    ref_odd = jax.block_until_ready(eca_layer_ref(x_odd, conv_w))
    out_odd_fused = jax.block_until_ready(
        eca_layer_pallas(x_odd, conv_w, block_budget_bytes=80_000))   # bt=2, 2 steps
    assert jnp.allclose(out_odd_fused, ref_odd, atol=1e-4, rtol=1e-4), \
        "ragged fused path mismatch"
    out_odd_two = jax.block_until_ready(
        eca_layer_pallas(x_odd, conv_w, block_budget_bytes=20_000))   # thw=128, masked tail
    assert jnp.allclose(out_odd_two, ref_odd, atol=1e-4, rtol=1e-4), \
        "ragged two-pass path mismatch"

    print("KERNEL_OK")
</pallas_src>

<mosaic_0001>
module attributes {stable_mosaic.version = 11 : i64} {
  func.func @_eca_fused_band_kernel(%arg0: i32, %arg1: memref<32x32xf32, #tpu.memory_space<vmem>>, %arg2: memref<2x32x256xf32, #tpu.memory_space<vmem>>, %arg3: memref<2x32x256xf32, #tpu.memory_space<vmem>>) attributes {dimension_semantics = [#tpu.dimension_semantics<parallel>], iteration_bounds = array<i64: 1>, scalar_prefetch = 0 : i64, scratch_operands = 0 : i64, tpu.core_type = #tpu.core_type<tc>, window_params = [{pipeline_mode = #tpu.pipeline_mode<synchronous>, transform_indices = @transform_0, window_bounds = array<i64: 32, 32>}, {transform_indices = @transform_1, window_bounds = array<i64: 2, 32, 256>}, {transform_indices = @transform_2, window_bounds = array<i64: 2, 32, 256>}]} {
    %c0 = arith.constant 0 : index
    %c0_0 = arith.constant 0 : index
    %c0_1 = arith.constant 0 : index
    %0 = vector.load %arg2[%c0, %c0_0, %c0_1] : memref<2x32x256xf32, #tpu.memory_space<vmem>>, vector<2x32x256xf32>
    %cst = arith.constant dense<0.000000e+00> : vector<2x32xf32>
    %1 = vector.multi_reduction <add>, %0, %cst [2] : vector<2x32x256xf32> to vector<2x32xf32>
    %cst_2 = arith.constant 3.906250e-03 : f32
    %2 = vector.broadcast %cst_2 : f32 to vector<2x32xf32>
    %3 = arith.mulf %1, %2 : vector<2x32xf32>
    %c0_3 = arith.constant 0 : index
    %c0_4 = arith.constant 0 : index
    %4 = vector.load %arg1[%c0_3, %c0_4] : memref<32x32xf32, #tpu.memory_space<vmem>>, vector<32x32xf32>
    %cst_5 = arith.constant dense<0.000000e+00> : vector<2x32xf32>
    %5 = tpu.matmul %3, %4, %cst_5 {dimension_numbers = #tpu.dot_dimension_numbers<[1], [0], [0], [1], [0, 0, 1, 1], [], []>, precision = #tpu.contract_precision<fp32>} : vector<2x32xf32>, vector<32x32xf32>, vector<2x32xf32> -> vector<2x32xf32>
    %6 = arith.negf %5 : vector<2x32xf32>
    %7 = math.exp %6 : vector<2x32xf32>
    %cst_6 = arith.constant 1.000000e+00 : f32
    %8 = vector.broadcast %cst_6 : f32 to vector<2x32xf32>
    %9 = arith.addf %8, %7 : vector<2x32xf32>
    %10 = arith.divf %8, %9 : vector<2x32xf32>
    %11 = vector.shape_cast %10 : vector<2x32xf32> to vector<2x32x1xf32>
    %12 = vector.broadcast %11 : vector<2x32x1xf32> to vector<2x32x256xf32>
    %13 = arith.mulf %0, %12 : vector<2x32x256xf32>
    %c0_7 = arith.constant 0 : index
    %c0_8 = arith.constant 0 : index
    %c0_9 = arith.constant 0 : index
    %14 = vector.load %arg3[%c0_7, %c0_8, %c0_9] : memref<2x32x256xf32, #tpu.memory_space<vmem>>, vector<2x32x256xf32>
    tpu.vector_store %arg3[%c0_7, %c0_8, %c0_9], %13 {strides = array<i32>} : memref<2x32x256xf32, #tpu.memory_space<vmem>>, vector<2x32x256xf32>,
    return
  }
  func.func @transform_0(%arg0: i32) -> (i32, i32) {
    %c0_i32 = arith.constant 0 : i32
    %c0_i32_0 = arith.constant 0 : i32
    %c0_i32_1 = arith.constant 0 : i32
    return %c0_i32, %c0_i32_0 : i32, i32
  }
  func.func @transform_1(%arg0: i32) -> (i32, i32, i32) {
    %c0_i32 = arith.constant 0 : i32
    %c0_i32_0 = arith.constant 0 : i32
    %c0_i32_1 = arith.constant 0 : i32
    return %arg0, %c0_i32, %c0_i32_0 : i32, i32, i32
  }
  func.func @transform_2(%arg0: i32) -> (i32, i32, i32) {
    %c0_i32 = arith.constant 0 : i32
    %c0_i32_0 = arith.constant 0 : i32
    %c0_i32_1 = arith.constant 0 : i32
    return %arg0, %c0_i32, %c0_i32_0 : i32, i32, i32
  }
}

</mosaic_0001>

<llo_original>
// kernel: tpu_custom_call.1
$region0: #{tpu_custom_call.1}
  #allocation0 [shape = 'u32[]', space=smem, size = 0x4, offset = 0x4, fixed_abs, tag = 'smem constant byte address 0x4 - core index']
  #allocation1 [shape = 'u32[144,128]{1,0:T(1,128)}', space=vmem, size = 0x12000, scoped, tag = 'internal scratch']
  %s0 = inlined_call_operand.hbm [shape: f32[32,32], index: 0, kind: input, shape index: {}]
  %s1 = inlined_call_operand.hbm [shape: f32[2,32,256], index: 1, kind: input, shape index: {}]
  %s2 = inlined_call_operand.hbm [shape: f32[2,32,256], index: 2, kind: output, shape index: {}]
  %s3 = sld [smem:[#allocation0]]
  $region26: #{tpu_custom_call.1} parent=0
    _
  %s5 = ssub.s32 1, %s3
  %s6 = scalar_select 0, %s5, %s3
  $region1: #{tpu_custom_call.1} parent=0
    #allocation2 [shape = 'u8[16384]{0}', space=vmem, size = 0x4000, scoped, tag = 'input window, operand 0, single buffered']
    #allocation3 [shape = 's32[1]{0}', space=sflag, size = 0x4, scoped, tag = 'scoped memory for tpu_custom_call.1']
    #allocation4 [shape = 's32[1]{0}', space=sflag, size = 0x4, scoped, tag = 'scoped memory for tpu_custom_call.1']
    #allocation5 [shape = 'u8[65536]{0}', space=vmem, size = 0x10000, scoped, tag = 'input window, operand 1, single buffered']
    #allocation6 [shape = 's32[1]{0}', space=sflag, size = 0x4, scoped, tag = 'scoped memory for tpu_custom_call.1']
    #allocation7 [shape = 'u8[65536]{0}', space=vmem, size = 0x10000, scoped, tag = 'output window, operand 0, single buffered']
    %7 = vsyncpa [#allocation3], 0
    %8 = vsyncpa [#allocation6], 0
    %9 = vsyncpa [#allocation4], 0
    // Predicated region
    $region2: #{tpu_custom_call.1} parent=1 // pred_check
      _
    $region3: #{tpu_custom_call.1} parent=1 // pred_check_branch
      %11 = sbr.rel (0) target = $region5
    $region4: #{tpu_custom_call.1} parent=1 // pred_region
      %s13 = ssub.s32 512, 512
      %14 = vsyncadd [#allocation3], %s13
      %s15 = sshll.u32 [#allocation2], 4
      %s16 = int_to_ptr.vmem [resolvable:$true] %s15
      %21 = dma.hbm_to_vmem [thread:$0]  %s0, 512, %s16, [#allocation3], 128, 128, 8
    $region5: #{tpu_custom_call.1} parent=1 // pred_fallthru
      _
    // Predicated region
    $region6: #{tpu_custom_call.1} parent=1 // pred_check
      _
    $region7: #{tpu_custom_call.1} parent=1 // pred_check_branch
      %23 = sbr.rel (0) target = $region9
    $region8: #{tpu_custom_call.1} parent=1 // pred_region
      %s25 = ssub.s32 2048, 2048
      %26 = vsyncadd [#allocation6], %s25
      %s27 = sshll.u32 [#allocation5], 4
      %s28 = int_to_ptr.vmem [resolvable:$true] %s27
      %33 = dma.hbm_to_vmem [thread:$0]  %s1, 2048, %s28, [#allocation6], 256, 256, 16
    $region9: #{tpu_custom_call.1} parent=1 // pred_fallthru
      _
    // Predicated region
    $region10: #{tpu_custom_call.1} parent=1 // pred_check
      _
    $region11: #{tpu_custom_call.1} parent=1 // pred_check_branch
      %35 = sbr.rel (0) target = $region13
    $region12: #{tpu_custom_call.1} parent=1 // pred_region
      %36 = dma.done [#allocation3], 512
    $region13: #{tpu_custom_call.1} parent=1 // pred_fallthru
      _
    // Predicated region
    $region14: #{tpu_custom_call.1} parent=1 // pred_check
      _
    $region15: #{tpu_custom_call.1} parent=1 // pred_check_branch
      %38 = sbr.rel (0) target = $region17
    $region16: #{tpu_custom_call.1} parent=1 // pred_region
      %39 = dma.done [#allocation6], 2048
    $region17: #{tpu_custom_call.1} parent=1 // pred_fallthru
      _
    %v40 = vld [vmem:[#allocation5] sm:$0xff]
    %v41 = vld [vmem:[#allocation5 + $0x8] sm:$0xff]
    %v42 = vld [vmem:[#allocation5 + $0x10] sm:$0xff]
    %v43 = vld [vmem:[#allocation5 + $0x18] sm:$0xff]
    %v44 = vld [vmem:[#allocation5 + $0x20] sm:$0xff]
    %v45 = vld [vmem:[#allocation5 + $0x28] sm:$0xff]
    %v46 = vld [vmem:[#allocation5 + $0x30] sm:$0xff]
    %v47 = vld [vmem:[#allocation5 + $0x38] sm:$0xff]
    %v48 = vld [vmem:[#allocation5 + $0x40] sm:$0xff]
    %v49 = vld [vmem:[#allocation5 + $0x48] sm:$0xff]
    %v50 = vld [vmem:[#allocation5 + $0x50] sm:$0xff]
    %v51 = vld [vmem:[#allocation5 + $0x58] sm:$0xff]
    %v52 = vld [vmem:[#allocation5 + $0x60] sm:$0xff]
    %v53 = vld [vmem:[#allocation5 + $0x68] sm:$0xff]
    %v54 = vld [vmem:[#allocation5 + $0x70] sm:$0xff]
    %v55 = vld [vmem:[#allocation5 + $0x78] sm:$0xff]
    %v56 = vadd.f32 %v40, %v41
    %57 = vadd.xlane.f32.xlu0 %v56
    %v58 = vpop.xlane.xlu0 %57
    %v59 = vadd.f32 %v42, %v43
    %60 = vadd.xlane.f32.xlu0 %v59
    %v61 = vpop.xlane.xlu0 %60
    %v62 = vadd.f32 %v44, %v45
    %63 = vadd.xlane.f32.xlu0 %v62
    %v64 = vpop.xlane.xlu0 %63
    %v65 = vadd.f32 %v46, %v47
    %66 = vadd.xlane.f32.xlu0 %v65
    %v67 = vpop.xlane.xlu0 %66
    %v68 = vadd.f32 %v48, %v49
    %69 = vadd.xlane.f32.xlu0 %v68
    %v70 = vpop.xlane.xlu0 %69
    %v71 = vadd.f32 %v50, %v51
    %72 = vadd.xlane.f32.xlu0 %v71
    %v73 = vpop.xlane.xlu0 %72
    %v74 = vadd.f32 %v52, %v53
    %75 = vadd.xlane.f32.xlu0 %v74
    %v76 = vpop.xlane.xlu0 %75
    %v77 = vadd.f32 %v54, %v55
    %78 = vadd.xlane.f32.xlu0 %v77
    %v79 = vpop.xlane.xlu0 %78
    %v80 = vmul.f32 %v58, 0.00390625
    %v81 = vmul.f32 %v61, 0.00390625
    %v82 = vmul.f32 %v64, 0.00390625
    %v83 = vmul.f32 %v67, 0.00390625
    %v84 = vmul.f32 %v70, 0.00390625
    %v85 = vmul.f32 %v73, 0.00390625
    %v86 = vmul.f32 %v76, 0.00390625
    %v87 = vmul.f32 %v79, 0.00390625
    %v88 = vld [vmem:[#allocation2] sm:$0xff]
    %v89 = vld [vmem:[#allocation2 + $0x8] sm:$0xff]
    %v90 = vld [vmem:[#allocation2 + $0x10] sm:$0xff]
    %v91 = vld [vmem:[#allocation2 + $0x18] sm:$0xff]
    %v100 = vlaneseq
    %v101 = vand.u32 %v100, 127
    %v102 = vlaneseq
    %v103 = vshrl.u32 %v102, 7
    %v104 = vsub.s32 %v101, %v103
    %v105 = vrot.slane %v80, %v104
    %v106 = vadd.s32 %v101, 4294967288
    %v107 = vlaneseq
    %v108 = vshrl.u32 %v107, 7
    %v109 = vsub.s32 %v106, %v108
    %v110 = vrot.slane %v81, %v109
    %vm111 = vcmask 130112
    %v112 = vsel %vm111, %v110, %v105
    %v113 = vadd.s32 %v101, 4294967280
    %v114 = vlaneseq
    %v115 = vshrl.u32 %v114, 7
    %v116 = vsub.s32 %v113, %v115
    %v117 = vrot.slane %v82, %v116
    %vm118 = vcmask 195712
    %v119 = vsel %vm118, %v117, %v112
    %v120 = vadd.s32 %v101, 4294967272
    %v121 = vlaneseq
    %v122 = vshrl.u32 %v121, 7
    %v123 = vsub.s32 %v120, %v122
    %v124 = vrot.slane %v83, %v123
    %vm125 = vcmask 261312
    %v126 = vsel %vm125, %v124, %v119
    %v127 = vlaneseq
    %v128 = vshrl.u32 %v127, 7
    %v129 = vsub.s32 %v101, %v128
    %v130 = vrot.slane %v84, %v129
    %v131 = vlaneseq
    %v132 = vshrl.u32 %v131, 7
    %v133 = vsub.s32 %v106, %v132
    %v134 = vrot.slane %v85, %v133
    %v135 = vsel %vm111, %v134, %v130
    %v136 = vlaneseq
    %v137 = vshrl.u32 %v136, 7
    %v138 = vsub.s32 %v113, %v137
    %v139 = vrot.slane %v86, %v138
    %v140 = vsel %vm118, %v139, %v135
    %v141 = vlaneseq
    %v142 = vshrl.u32 %v141, 7
    %v143 = vsub.s32 %v120, %v142
    %v144 = vrot.slane %v87, %v143
    %v145 = vsel %vm125, %v144, %v140
    %vm146 = vcmask 1041409
    %v147 = vsel %vm146, %v145, %v126
    %vm148 = vcmask 261120
    %v149 = vsel %vm148, %v147, 0
    %151 = vmatprep.subr.mxu0 0.0
    %v152 = vand.u32 %v88, 4294901760
    %153 = vmatpush1.msra.mxu0 %v152
    %154 = vmatprep.subr.mxu0 0.0
    %v155 = vand.u32 %v89, 4294901760
    %156 = vmatpush1.msra.mxu0 %v155
    %157 = vmatprep.subr.mxu0 0.0
    %v158 = vand.u32 %v90, 4294901760
    %159 = vmatpush1.msra.mxu0 %v158
    %160 = vmatprep.subr.mxu0 0.0
    %v161 = vand.u32 %v91, 4294901760
    %162 = vmatpush1.msra.mxu0 %v161
    %163 = vmatprep.subr.mxu0 0.0
    %164 = vmatpush1.msra.mxu0 0.0
    %165 = vmatprep.subr.mxu0 0.0
    %166 = vmatpush1.msra.mxu0 0.0
    %167 = vmatprep.subr.mxu0 0.0
    %168 = vmatpush1.msra.mxu0 0.0
    %169 = vmatprep.subr.mxu0 0.0
    %170 = vmatpush1.msra.mxu0 0.0
    %171 = vmatprep.subr.mxu0 0.0
    %172 = vmatpush1.msra.mxu0 0.0
    %173 = vmatprep.subr.mxu0 0.0
    %174 = vmatpush1.msra.mxu0 0.0
    %175 = vmatprep.subr.mxu0 0.0
    %176 = vmatpush1.msra.mxu0 0.0
    %177 = vmatprep.subr.mxu0 0.0
    %178 = vmatpush1.msra.mxu0 0.0
    %179 = vmatprep.subr.mxu0 0.0
    %180 = vmatpush1.msra.mxu0 0.0
    %181 = vmatprep.subr.mxu0 0.0
    %182 = vmatpush1.msra.mxu0 0.0
    %183 = vmatprep.subr.mxu0 0.0
    %184 = vmatpush1.msra.mxu0 0.0
    %185 = vmatprep.subr.mxu0 0.0
    %186 = vmatpush1.msra.mxu0 0.0
    %187 = vmatprep.subr.mxu0 0.0
    %188 = vmatpush1.msra.mxu0 0.0
    %189 = vmatprep.subr.mxu0 0.0
    %190 = vmatpush1.msra.mxu0 0.0
    %191 = vmatprep.subr.mxu0 0.0
    %192 = vmatpush1.msra.mxu0 0.0
    %193 = vmatprep.subr.mxu0 0.0
    %194 = vmatpush1.msra.mxu0 0.0
    %195 = vmatprep.subr.mxu0 0.0
    %196 = vmatpush1.msra.mxu0 0.0
    %197 = vmatprep.subr.mxu0 0.0
    %198 = vmatpush1.msra.mxu0 0.0
    %199 = vmatprep.subr.mxu0 0.0
    %200 = vmatpush1.msra.mxu0 0.0
    %201 = vmatprep.subr.mxu0 0.0
    %202 = vmatpush1.msra.mxu0 0.0
    %203 = vmatprep.subr.mxu0 0.0
    %204 = vmatpush1.msra.mxu0 0.0
    %205 = vmatprep.subr.mxu0 0.0
    %206 = vmatpush1.msra.mxu0 0.0
    %207 = vmatprep.subr.mxu0 0.0
    %208 = vmatpush1.msra.mxu0 0.0
    %209 = vmatprep.subr.mxu0 0.0
    %210 = vmatpush1.msra.mxu0 0.0
    %211 = vmatprep.subr.mxu0 0.0
    %212 = vmatpush1.msra.mxu0 0.0
    %213 = vmatprep.subr.mxu0 0.0
    %214 = vmatpush1.msra.mxu0 0.0
    %215 = vmatprep.subr.mxu0 0.0
    %216 = vmatpush1.msra.mxu0 0.0
    %217 = vmatprep.subr.mxu0 0.0
    %218 = vmatpush1.msra.mxu0 0.0
    %219 = vmatprep.mubr.f32.mxu0 0.0
    %v220 = vand.u32 %v149, 4294901760
    %v221 = vsub.f32 %v149, %v220
    %v222 = vand.u32 %v221, 4294901760
    %v223 = vsub.f32 %v221, %v222
    %v224 = vand.u32 %v223, 4294901760
    %225 = vmatmul.mubr.f32.gmra.mrb[0].mxu0 %v224
    %v226 = vpop.f32.mrb[0].mxu0
    %v227 = vadd.f32 0.0, %v226
    %v228 = vpop.f32.mrb[0].mxu0
    %229 = vdwg.mxu0
    %230 = vmatprep.subr.mxu0 0.0
    %v231 = vand.u32 %v88, 4294901760
    %v232 = vsub.f32 %v88, %v231
    %v233 = vand.u32 %v232, 4294901760
    %v234 = vsub.f32 %v232, %v233
    %v235 = vand.u32 %v234, 4294901760
    %236 = vmatpush1.msra.mxu0 %v235
    %237 = vmatprep.subr.mxu0 0.0
    %v238 = vand.u32 %v89, 4294901760
    %v239 = vsub.f32 %v89, %v238
    %v240 = vand.u32 %v239, 4294901760
    %v241 = vsub.f32 %v239, %v240
    %v242 = vand.u32 %v241, 4294901760
    %243 = vmatpush1.msra.mxu0 %v242
    %244 = vmatprep.subr.mxu0 0.0
    %v245 = vand.u32 %v90, 4294901760
    %v246 = vsub.f32 %v90, %v245
    %v247 = vand.u32 %v246, 4294901760
    %v248 = vsub.f32 %v246, %v247
    %v249 = vand.u32 %v248, 4294901760
    %250 = vmatpush1.msra.mxu0 %v249
    %251 = vmatprep.subr.mxu0 0.0
    %v252 = vand.u32 %v91, 4294901760
    %v253 = vsub.f32 %v91, %v252
    %v254 = vand.u32 %v253, 4294901760
    %v255 = vsub.f32 %v253, %v254
    %v256 = vand.u32 %v255, 4294901760
    %257 = vmatpush1.msra.mxu0 %v256
    %258 = vmatprep.subr.mxu0 0.0
    %259 = vmatpush1.msra.mxu0 0.0
    %260 = vmatprep.subr.mxu0 0.0
    %261 = vmatpush1.msra.mxu0 0.0
    %262 = vmatprep.subr.mxu0 0.0
    %263 = vmatpush1.msra.mxu0 0.0
    %264 = vmatprep.subr.mxu0 0.0
    %265 = vmatpush1.msra.mxu0 0.0
    %266 = vmatprep.subr.mxu0 0.0
    %267 = vmatpush1.msra.mxu0 0.0
    %268 = vmatprep.subr.mxu0 0.0
    %269 = vmatpush1.msra.mxu0 0.0
    %270 = vmatprep.subr.mxu0 0.0
    %271 = vmatpush1.msra.mxu0 0.0
    %272 = vmatprep.subr.mxu0 0.0
    %273 = vmatpush1.msra.mxu0 0.0
    %274 = vmatprep.subr.mxu0 0.0
    %275 = vmatpush1.msra.mxu0 0.0
    %276 = vmatprep.subr.mxu0 0.0
    %277 = vmatpush1.msra.mxu0 0.0
    %278 = vmatprep.subr.mxu0 0.0
    %279 = vmatpush1.msra.mxu0 0.0
    %280 = vmatprep.subr.mxu0 0.0
    %281 = vmatpush1.msra.mxu0 0.0
    %282 = vmatprep.subr.mxu0 0.0
    %283 = vmatpush1.msra.mxu0 0.0
    %284 = vmatprep.subr.mxu0 0.0
    %285 = vmatpush1.msra.mxu0 0.0
    %286 = vmatprep.subr.mxu0 0.0
    %287 = vmatpush1.msra.mxu0 0.0
    %288 = vmatprep.subr.mxu0 0.0
    %289 = vmatpush1.msra.mxu0 0.0
    %290 = vmatprep.subr.mxu0 0.0
    %291 = vmatpush1.msra.mxu0 0.0
    %292 = vmatprep.subr.mxu0 0.0
    %293 = vmatpush1.msra.mxu0 0.0
    %294 = vmatprep.subr.mxu0 0.0
    %295 = vmatpush1.msra.mxu0 0.0
    %296 = vmatprep.subr.mxu0 0.0
    %297 = vmatpush1.msra.mxu0 0.0
    %298 = vmatprep.subr.mxu0 0.0
    %299 = vmatpush1.msra.mxu0 0.0
    %300 = vmatprep.subr.mxu0 0.0
    %301 = vmatpush1.msra.mxu0 0.0
    %302 = vmatprep.subr.mxu0 0.0
    %303 = vmatpush1.msra.mxu0 0.0
    %304 = vmatprep.subr.mxu0 0.0
    %305 = vmatpush1.msra.mxu0 0.0
    %306 = vmatprep.subr.mxu0 0.0
    %307 = vmatpush1.msra.mxu0 0.0
    %308 = vmatprep.subr.mxu0 0.0
    %309 = vmatpush1.msra.mxu0 0.0
    %310 = vmatprep.subr.mxu0 0.0
    %311 = vmatpush1.msra.mxu0 0.0
    %312 = vmatprep.subr.mxu0 0.0
    %313 = vmatpush1.msra.mxu0 0.0
    %314 = vmatprep.mubr.f32.mxu0 0.0
    %v315 = vand.u32 %v149, 4294901760
    %316 = vmatmul.mubr.f32.gmra.mrb[0].mxu0 %v315
    %v317 = vpop.f32.mrb[0].mxu0
    %v318 = vadd.f32 %v227, %v317
    %v319 = vpop.f32.mrb[0].mxu0
    %320 = vdwg.mxu0
    %321 = vmatprep.subr.mxu0 0.0
    %v322 = vand.u32 %v88, 4294901760
    %v323 = vsub.f32 %v88, %v322
    %324 = vmatpush1.msra.mxu0 %v323
    %325 = vmatprep.subr.mxu0 0.0
    %v326 = vand.u32 %v89, 4294901760
    %v327 = vsub.f32 %v89, %v326
    %328 = vmatpush1.msra.mxu0 %v327
    %329 = vmatprep.subr.mxu0 0.0
    %v330 = vand.u32 %v90, 4294901760
    %v331 = vsub.f32 %v90, %v330
    %332 = vmatpush1.msra.mxu0 %v331
    %333 = vmatprep.subr.mxu0 0.0
    %v334 = vand.u32 %v91, 4294901760
    %v335 = vsub.f32 %v91, %v334
    %336 = vmatpush1.msra.mxu0 %v335
    %337 = vmatprep.subr.mxu0 0.0
    %338 = vmatpush1.msra.mxu0 0.0
    %339 = vmatprep.subr.mxu0 0.0
    %340 = vmatpush1.msra.mxu0 0.0
    %341 = vmatprep.subr.mxu0 0.0
    %342 = vmatpush1.msra.mxu0 0.0
    %343 = vmatprep.subr.mxu0 0.0
    %344 = vmatpush1.msra.mxu0 0.0
    %345 = vmatprep.subr.mxu0 0.0
    %346 = vmatpush1.msra.mxu0 0.0
    %347 = vmatprep.subr.mxu0 0.0
    %348 = vmatpush1.msra.mxu0 0.0
    %349 = vmatprep.subr.mxu0 0.0
    %350 = vmatpush1.msra.mxu0 0.0
    %351 = vmatprep.subr.mxu0 0.0
    %352 = vmatpush1.msra.mxu0 0.0
    %353 = vmatprep.subr.mxu0 0.0
    %354 = vmatpush1.msra.mxu0 0.0
    %355 = vmatprep.subr.mxu0 0.0
    %356 = vmatpush1.msra.mxu0 0.0
    %357 = vmatprep.subr.mxu0 0.0
    %358 = vmatpush1.msra.mxu0 0.0
    %359 = vmatprep.subr.mxu0 0.0
    %360 = vmatpush1.msra.mxu0 0.0
    %361 = vmatprep.subr.mxu0 0.0
    %362 = vmatpush1.msra.mxu0 0.0
    %363 = vmatprep.subr.mxu0 0.0
    %364 = vmatpush1.msra.mxu0 0.0
    %365 = vmatprep.subr.mxu0 0.0
    %366 = vmatpush1.msra.mxu0 0.0
    %367 = vmatprep.subr.mxu0 0.0
    %368 = vmatpush1.msra.mxu0 0.0
    %369 = vmatprep.subr.mxu0 0.0
    %370 = vmatpush1.msra.mxu0 0.0
    %371 = vmatprep.subr.mxu0 0.0
    %372 = vmatpush1.msra.mxu0 0.0
    %373 = vmatprep.subr.mxu0 0.0
    %374 = vmatpush1.msra.mxu0 0.0
    %375 = vmatprep.subr.mxu0 0.0
    %376 = vmatpush1.msra.mxu0 0.0
    %377 = vmatprep.subr.mxu0 0.0
    %378 = vmatpush1.msra.mxu0 0.0
    %379 = vmatprep.subr.mxu0 0.0
    %380 = vmatpush1.msra.mxu0 0.0
    %381 = vmatprep.subr.mxu0 0.0
    %382 = vmatpush1.msra.mxu0 0.0
    %383 = vmatprep.subr.mxu0 0.0
    %384 = vmatpush1.msra.mxu0 0.0
    %385 = vmatprep.subr.mxu0 0.0
    %386 = vmatpush1.msra.mxu0 0.0
    %387 = vmatprep.subr.mxu0 0.0
    %388 = vmatpush1.msra.mxu0 0.0
    %389 = vmatprep.subr.mxu0 0.0
    %390 = vmatpush1.msra.mxu0 0.0
    %391 = vmatprep.subr.mxu0 0.0
    %392 = vmatpush1.msra.mxu0 0.0
    %393 = vmatprep.mubr.f32.mxu0 0.0
    %v394 = vand.u32 %v149, 4294901760
    %v395 = vsub.f32 %v149, %v394
    %396 = vmatmul.mubr.f32.gmra.mrb[0].mxu0 %v395
    %v397 = vpop.f32.mrb[0].mxu0
    %v398 = vadd.f32 %v318, %v397
    %v399 = vpop.f32.mrb[0].mxu0
    %400 = vdwg.mxu0
    %401 = vmatprep.subr.mxu0 0.0
    %v402 = vand.u32 %v88, 4294901760
    %403 = vmatpush1.msra.mxu0 %v402
    %404 = vmatprep.subr.mxu0 0.0
    %v405 = vand.u32 %v89, 4294901760
    %406 = vmatpush1.msra.mxu0 %v405
    %407 = vmatprep.subr.mxu0 0.0
    %v408 = vand.u32 %v90, 4294901760
    %409 = vmatpush1.msra.mxu0 %v408
    %410 = vmatprep.subr.mxu0 0.0
    %v411 = vand.u32 %v91, 4294901760
    %412 = vmatpush1.msra.mxu0 %v411
    %413 = vmatprep.subr.mxu0 0.0
    %414 = vmatpush1.msra.mxu0 0.0
    %415 = vmatprep.subr.mxu0 0.0
    %416 = vmatpush1.msra.mxu0 0.0
    %417 = vmatprep.subr.mxu0 0.0
    %418 = vmatpush1.msra.mxu0 0.0
    %419 = vmatprep.subr.mxu0 0.0
    %420 = vmatpush1.msra.mxu0 0.0
    %421 = vmatprep.subr.mxu0 0.0
    %422 = vmatpush1.msra.mxu0 0.0
    %423 = vmatprep.subr.mxu0 0.0
    %424 = vmatpush1.msra.mxu0 0.0
    %425 = vmatprep.subr.mxu0 0.0
    %426 = vmatpush1.msra.mxu0 0.0
    %427 = vmatprep.subr.mxu0 0.0
    %428 = vmatpush1.msra.mxu0 0.0
    %429 = vmatprep.subr.mxu0 0.0
    %430 = vmatpush1.msra.mxu0 0.0
    %431 = vmatprep.subr.mxu0 0.0
    %432 = vmatpush1.msra.mxu0 0.0
    %433 = vmatprep.subr.mxu0 0.0
    %434 = vmatpush1.msra.mxu0 0.0
    %435 = vmatprep.subr.mxu0 0.0
    %436 = vmatpush1.msra.mxu0 0.0
    %437 = vmatprep.subr.mxu0 0.0
    %438 = vmatpush1.msra.mxu0 0.0
    %439 = vmatprep.subr.mxu0 0.0
    %440 = vmatpush1.msra.mxu0 0.0
    %441 = vmatprep.subr.mxu0 0.0
    %442 = vmatpush1.msra.mxu0 0.0
    %443 = vmatprep.subr.mxu0 0.0
    %444 = vmatpush1.msra.mxu0 0.0
    %445 = vmatprep.subr.mxu0 0.0
    %446 = vmatpush1.msra.mxu0 0.0
    %447 = vmatprep.subr.mxu0 0.0
    %448 = vmatpush1.msra.mxu0 0.0
    %449 = vmatprep.subr.mxu0 0.0
    %450 = vmatpush1.msra.mxu0 0.0
    %451 = vmatprep.subr.mxu0 0.0
    %452 = vmatpush1.msra.mxu0 0.0
    %453 = vmatprep.subr.mxu0 0.0
    %454 = vmatpush1.msra.mxu0 0.0
    %455 = vmatprep.subr.mxu0 0.0
    %456 = vmatpush1.msra.mxu0 0.0
    %457 = vmatprep.subr.mxu0 0.0
    %458 = vmatpush1.msra.mxu0 0.0
    %459 = vmatprep.subr.mxu0 0.0
    %460 = vmatpush1.msra.mxu0 0.0
    %461 = vmatprep.subr.mxu0 0.0
    %462 = vmatpush1.msra.mxu0 0.0
    %463 = vmatprep.subr.mxu0 0.0
    %464 = vmatpush1.msra.mxu0 0.0
    %465 = vmatprep.subr.mxu0 0.0
    %466 = vmatpush1.msra.mxu0 0.0
    %467 = vmatprep.subr.mxu0 0.0
    %468 = vmatpush1.msra.mxu0 0.0
    %469 = vmatprep.mubr.f32.mxu0 0.0
    %v470 = vand.u32 %v149, 4294901760
    %v471 = vsub.f32 %v149, %v470
    %v472 = vand.u32 %v471, 4294901760
    %473 = vmatmul.mubr.f32.gmra.mrb[0].mxu0 %v472
    %v474 = vpop.f32.mrb[0].mxu0
    %v475 = vadd.f32 %v398, %v474
    %v476 = vpop.f32.mrb[0].mxu0
    %477 = vdwg.mxu0
    %478 = vmatprep.subr.mxu0 0.0
    %v479 = vand.u32 %v88, 4294901760
    %v480 = vsub.f32 %v88, %v479
    %v481 = vand.u32 %v480, 4294901760
    %482 = vmatpush1.msra.mxu0 %v481
    %483 = vmatprep.subr.mxu0 0.0
    %v484 = vand.u32 %v89, 4294901760
    %v485 = vsub.f32 %v89, %v484
    %v486 = vand.u32 %v485, 4294901760
    %487 = vmatpush1.msra.mxu0 %v486
    %488 = vmatprep.subr.mxu0 0.0
    %v489 = vand.u32 %v90, 4294901760
    %v490 = vsub.f32 %v90, %v489
    %v491 = vand.u32 %v490, 4294901760
    %492 = vmatpush1.msra.mxu0 %v491
    %493 = vmatprep.subr.mxu0 0.0
    %v494 = vand.u32 %v91, 4294901760
    %v495 = vsub.f32 %v91, %v494
    %v496 = vand.u32 %v495, 4294901760
    %497 = vmatpush1.msra.mxu0 %v496
    %498 = vmatprep.subr.mxu0 0.0
    %499 = vmatpush1.msra.mxu0 0.0
    %500 = vmatprep.subr.mxu0 0.0
    %501 = vmatpush1.msra.mxu0 0.0
    %502 = vmatprep.subr.mxu0 0.0
    %503 = vmatpush1.msra.mxu0 0.0
    %504 = vmatprep.subr.mxu0 0.0
    %505 = vmatpush1.msra.mxu0 0.0
    %506 = vmatprep.subr.mxu0 0.0
    %507 = vmatpush1.msra.mxu0 0.0
    %508 = vmatprep.subr.mxu0 0.0
    %509 = vmatpush1.msra.mxu0 0.0
    %510 = vmatprep.subr.mxu0 0.0
    %511 = vmatpush1.msra.mxu0 0.0
    %512 = vmatprep.subr.mxu0 0.0
    %513 = vmatpush1.msra.mxu0 0.0
    %514 = vmatprep.subr.mxu0 0.0
    %515 = vmatpush1.msra.mxu0 0.0
    %516 = vmatprep.subr.mxu0 0.0
    %517 = vmatpush1.msra.mxu0 0.0
    %518 = vmatprep.subr.mxu0 0.0
    %519 = vmatpush1.msra.mxu0 0.0
    %520 = vmatprep.subr.mxu0 0.0
    %521 = vmatpush1.msra.mxu0 0.0
    %522 = vmatprep.subr.mxu0 0.0
    %523 = vmatpush1.msra.mxu0 0.0
    %524 = vmatprep.subr.mxu0 0.0
    %525 = vmatpush1.msra.mxu0 0.0
    %526 = vmatprep.subr.mxu0 0.0
    %527 = vmatpush1.msra.mxu0 0.0
    %528 = vmatprep.subr.mxu0 0.0
    %529 = vmatpush1.msra.mxu0 0.0
    %530 = vmatprep.subr.mxu0 0.0
    %531 = vmatpush1.msra.mxu0 0.0
    %532 = vmatprep.subr.mxu0 0.0
    %533 = vmatpush1.msra.mxu0 0.0
    %534 = vmatprep.subr.mxu0 0.0
    %535 = vmatpush1.msra.mxu0 0.0
    %536 = vmatprep.subr.mxu0 0.0
    %537 = vmatpush1.msra.mxu0 0.0
    %538 = vmatprep.subr.mxu0 0.0
    %539 = vmatpush1.msra.mxu0 0.0
    %540 = vmatprep.subr.mxu0 0.0
    %541 = vmatpush1.msra.mxu0 0.0
    %542 = vmatprep.subr.mxu0 0.0
    %543 = vmatpush1.msra.mxu0 0.0
    %544 = vmatprep.subr.mxu0 0.0
    %545 = vmatpush1.msra.mxu0 0.0
    %546 = vmatprep.subr.mxu0 0.0
    %547 = vmatpush1.msra.mxu0 0.0
    %548 = vmatprep.subr.mxu0 0.0
    %549 = vmatpush1.msra.mxu0 0.0
    %550 = vmatprep.subr.mxu0 0.0
    %551 = vmatpush1.msra.mxu0 0.0
    %552 = vmatprep.subr.mxu0 0.0
    %553 = vmatpush1.msra.mxu0 0.0
    %554 = vmatprep.mubr.f32.mxu0 0.0
    %v555 = vand.u32 %v149, 4294901760
    %556 = vmatmul.mubr.f32.gmra.mrb[0].mxu0 %v555
    %v557 = vpop.f32.mrb[0].mxu0
    %v558 = vadd.f32 %v475, %v557
    %v559 = vpop.f32.mrb[0].mxu0
    %560 = vdwg.mxu0
    %561 = vmatprep.subr.mxu0 0.0
    %v562 = vand.u32 %v88, 4294901760
    %563 = vmatpush1.msra.mxu0 %v562
    %564 = vmatprep.subr.mxu0 0.0
    %v565 = vand.u32 %v89, 4294901760
    %566 = vmatpush1.msra.mxu0 %v565
    %567 = vmatprep.subr.mxu0 0.0
    %v568 = vand.u32 %v90, 4294901760
    %569 = vmatpush1.msra.mxu0 %v568
    %570 = vmatprep.subr.mxu0 0.0
    %v571 = vand.u32 %v91, 4294901760
    %572 = vmatpush1.msra.mxu0 %v571
    %573 = vmatprep.subr.mxu0 0.0
    %574 = vmatpush1.msra.mxu0 0.0
    %575 = vmatprep.subr.mxu0 0.0
    %576 = vmatpush1.msra.mxu0 0.0
    %577 = vmatprep.subr.mxu0 0.0
    %578 = vmatpush1.msra.mxu0 0.0
    %579 = vmatprep.subr.mxu0 0.0
    %580 = vmatpush1.msra.mxu0 0.0
    %581 = vmatprep.subr.mxu0 0.0
    %582 = vmatpush1.msra.mxu0 0.0
    %583 = vmatprep.subr.mxu0 0.0
    %584 = vmatpush1.msra.mxu0 0.0
    %585 = vmatprep.subr.mxu0 0.0
    %586 = vmatpush1.msra.mxu0 0.0
    %587 = vmatprep.subr.mxu0 0.0
    %588 = vmatpush1.msra.mxu0 0.0
    %589 = vmatprep.subr.mxu0 0.0
    %590 = vmatpush1.msra.mxu0 0.0
    %591 = vmatprep.subr.mxu0 0.0
    %592 = vmatpush1.msra.mxu0 0.0
    %593 = vmatprep.subr.mxu0 0.0
    %594 = vmatpush1.msra.mxu0 0.0
    %595 = vmatprep.subr.mxu0 0.0
    %596 = vmatpush1.msra.mxu0 0.0
    %597 = vmatprep.subr.mxu0 0.0
    %598 = vmatpush1.msra.mxu0 0.0
    %599 = vmatprep.subr.mxu0 0.0
    %600 = vmatpush1.msra.mxu0 0.0
    %601 = vmatprep.subr.mxu0 0.0
    %602 = vmatpush1.msra.mxu0 0.0
    %603 = vmatprep.subr.mxu0 0.0
    %604 = vmatpush1.msra.mxu0 0.0
    %605 = vmatprep.subr.mxu0 0.0
    %606 = vmatpush1.msra.mxu0 0.0
    %607 = vmatprep.subr.mxu0 0.0
    %608 = vmatpush1.msra.mxu0 0.0
    %609 = vmatprep.subr.mxu0 0.0
    %610 = vmatpush1.msra.mxu0 0.0
    %611 = vmatprep.subr.mxu0 0.0
    %612 = vmatpush1.msra.mxu0 0.0
    %613 = vmatprep.subr.mxu0 0.0
    %614 = vmatpush1.msra.mxu0 0.0
    %615 = vmatprep.subr.mxu0 0.0
    %616 = vmatpush1.msra.mxu0 0.0
    %617 = vmatprep.subr.mxu0 0.0
    %618 = vmatpush1.msra.mxu0 0.0
    %619 = vmatprep.subr.mxu0 0.0
    %620 = vmatpush1.msra.mxu0 0.0
    %621 = vmatprep.subr.mxu0 0.0
    %622 = vmatpush1.msra.mxu0 0.0
    %623 = vmatprep.subr.mxu0 0.0
    %624 = vmatpush1.msra.mxu0 0.0
    %625 = vmatprep.subr.mxu0 0.0
    %626 = vmatpush1.msra.mxu0 0.0
    %627 = vmatprep.subr.mxu0 0.0
    %628 = vmatpush1.msra.mxu0 0.0
    %629 = vmatprep.mubr.f32.mxu0 0.0
    %v630 = vand.u32 %v149, 4294901760
    %631 = vmatmul.mubr.f32.gmra.mrb[0].mxu0 %v630
    %v632 = vpop.f32.mrb[0].mxu0
    %v633 = vadd.f32 %v558, %v632
    %v634 = vpop.f32.mrb[0].mxu0
    %635 = vdwg.mxu0
    %v636 = vxor.u32 %v633, 2147483648
    %v637 = vmul.f32 %v636, 1.442695
    %v638 = vpow.pop %v637
    %v639 = vadd.f32 %v638, 1.0
    %v640 = vrcp.pop %v639
    %v641 = vmul.f32 1.0, %v640
    %v642 = vlaneseq
    %v643 = vshrl.u32 %v642, 7
    %v644 = vsub.s32 0, %v643
    %v645 = vrot.slane %v641, %v644
    %647 = vbcast.lane.b32.xlu0 %v645, 256
    %v648 = vpop.permute.xlu0 %647
    %s650 = sor.u32 256, 8
    %651 = vbcast.lane.b32.xlu0 %v645, %s650
    %v652 = vpop.permute.xlu0 %651
    %s654 = sor.u32 256, 16
    %655 = vbcast.lane.b32.xlu0 %v645, %s654
    %v656 = vpop.permute.xlu0 %655
    %s658 = sor.u32 256, 24
    %659 = vbcast.lane.b32.xlu0 %v645, %s658
    %v660 = vpop.permute.xlu0 %659
    %v661 = vlaneseq
    %v662 = vshrl.u32 %v661, 7
    %v663 = vsub.s32 1, %v662
    %v664 = vrot.slane %v641, %v663
    %666 = vbcast.lane.b32.xlu0 %v664, 256
    %v667 = vpop.permute.xlu0 %666
    %s669 = sor.u32 256, 8
    %670 = vbcast.lane.b32.xlu0 %v664, %s669
    %v671 = vpop.permute.xlu0 %670
    %s673 = sor.u32 256, 16
    %674 = vbcast.lane.b32.xlu0 %v664, %s673
    %v675 = vpop.permute.xlu0 %674
    %s677 = sor.u32 256, 24
    %678 = vbcast.lane.b32.xlu0 %v664, %s677
    %v679 = vpop.permute.xlu0 %678
    %v680 = vmul.f32 %v40, %v648
    %v681 = vmul.f32 %v41, %v648
    %v682 = vmul.f32 %v42, %v652
    %v683 = vmul.f32 %v43, %v652
    %v684 = vmul.f32 %v44, %v656
    %v685 = vmul.f32 %v45, %v656
    %v686 = vmul.f32 %v46, %v660
    %v687 = vmul.f32 %v47, %v660
    %v688 = vmul.f32 %v48, %v667
    %v689 = vmul.f32 %v49, %v667
    %v690 = vmul.f32 %v50, %v671
    %v691 = vmul.f32 %v51, %v671
    %v692 = vmul.f32 %v52, %v675
    %v693 = vmul.f32 %v53, %v675
    %v694 = vmul.f32 %v54, %v679
    %v695 = vmul.f32 %v55, %v679
    %696 = vst [vmem:[#allocation7] sm:$0xff] %v680
    %697 = vst [vmem:[#allocation7 + $0x8] sm:$0xff] %v681
    %698 = vst [vmem:[#allocation7 + $0x10] sm:$0xff] %v682
    %699 = vst [vmem:[#allocation7 + $0x18] sm:$0xff] %v683
    %700 = vst [vmem:[#allocation7 + $0x20] sm:$0xff] %v684
    %701 = vst [vmem:[#allocation7 + $0x28] sm:$0xff] %v685
    %702 = vst [vmem:[#allocation7 + $0x30] sm:$0xff] %v686
    %703 = vst [vmem:[#allocation7 + $0x38] sm:$0xff] %v687
    %704 = vst [vmem:[#allocation7 + $0x40] sm:$0xff] %v688
    %705 = vst [vmem:[#allocation7 + $0x48] sm:$0xff] %v689
    %706 = vst [vmem:[#allocation7 + $0x50] sm:$0xff] %v690
    %707 = vst [vmem:[#allocation7 + $0x58] sm:$0xff] %v691
    %708 = vst [vmem:[#allocation7 + $0x60] sm:$0xff] %v692
    %709 = vst [vmem:[#allocation7 + $0x68] sm:$0xff] %v693
    %710 = vst [vmem:[#allocation7 + $0x70] sm:$0xff] %v694
    %711 = vst [vmem:[#allocation7 + $0x78] sm:$0xff] %v695
    // Predicated region
    $region18: #{tpu_custom_call.1} parent=1 // pred_check
      _
    $region19: #{tpu_custom_call.1} parent=1 // pred_check_branch
      %713 = sbr.rel (0) target = $region21
    $region20: #{tpu_custom_call.1} parent=1 // pred_region
      %s715 = ssub.s32 2048, 2048
      %716 = vsyncadd [#allocation4], %s715
      %s717 = sshll.u32 [#allocation7], 4
      %s718 = int_to_ptr.vmem [resolvable:$true] %s717
      %723 = dma.vmem_to_hbm [thread:$0]  %s718, 2048, %s2, [#allocation4], 256, 256, 16
    $region21: #{tpu_custom_call.1} parent=1 // pred_fallthru
      _
    // Predicated region
    $region22: #{tpu_custom_call.1} parent=1 // pred_check
      _
    $region23: #{tpu_custom_call.1} parent=1 // pred_check_branch
      %725 = sbr.rel (0) target = $region25
    $region24: #{tpu_custom_call.1} parent=1 // pred_region
      %726 = dma.done [#allocation4], 2048
    $region25: #{tpu_custom_call.1} parent=1 // pred_fallthru
      _
    %727 = vsyncpa [#allocation3], 1
    %728 = vsyncpa [#allocation6], 1
    %729 = vsyncpa [#allocation4], 1

</llo_original>
